<compile_context>
chip_gen: v5e
topology: v5e:2x2
jax: 0.10.0
libtpu: 0.0.40
codegen_flags: <defaults>
</compile_context>

<pallas_src>
import math

import jax
import jax.numpy as jnp
from jax.experimental import pallas as pl
from jax.experimental.pallas import tpu as pltpu


def _se_kernel(x_ref, w1_ref, b1_ref, w2_ref, b2_ref, o_ref):
    # x_ref: (1, C, T) — one batch element, native PyTorch NCT layout.
    x = x_ref[...]

    # AdaptiveAvgPool1d(1): mean over time -> (1, C).
    m = jnp.mean(x, axis=-1)

    # Conv1d(C -> K, kernel_size=1) + bias + ReLU  (1x1 conv == channel matmul).
    h = jnp.dot(m, w1_ref[...], preferred_element_type=jnp.float32) + b1_ref[...]
    h = jnp.maximum(h, 0.0)

    # Conv1d(K -> C, kernel_size=1) + bias + Sigmoid.
    s = jnp.dot(h, w2_ref[...], preferred_element_type=jnp.float32) + b2_ref[...]
    s = jax.nn.sigmoid(s)

    # Channel-wise gating, broadcast over time.
    o_ref[...] = (x * s[:, :, None]).astype(o_ref.dtype)


def se_module(x_nct, w1, b1, w2, b2):
    """SEModule forward.  x_nct: (B, C, T) float32 in PyTorch NCT layout."""
    B, C, T = x_nct.shape
    K = w1.shape[1]
    b1_2d = b1.reshape(1, K)
    b2_2d = b2.reshape(1, C)
    return pl.pallas_call(
        _se_kernel,
        out_shape=jax.ShapeDtypeStruct((B, C, T), x_nct.dtype),
        grid=(B,),
        in_specs=[
            pl.BlockSpec((1, C, T), lambda b: (b, 0, 0)),   # x: one batch slab
            pl.BlockSpec((C, K), lambda b: (0, 0)),          # w1 (resident)
            pl.BlockSpec((1, K), lambda b: (0, 0)),          # b1 (resident)
            pl.BlockSpec((K, C), lambda b: (0, 0)),          # w2 (resident)
            pl.BlockSpec((1, C), lambda b: (0, 0)),          # b2 (resident)
        ],
        out_specs=pl.BlockSpec((1, C, T), lambda b: (b, 0, 0)),
        compiler_params=pltpu.CompilerParams(
            dimension_semantics=("parallel",)),
    )(x_nct, w1, b1_2d, w2, b2_2d)


def init_params(key, channels, bottleneck=128):
    # Synthetic deterministic init (PyTorch Conv1d-style uniform bounds,
    # weights stored pre-transposed as (in, out) for right-multiplication).
    k1, k2, k3, k4 = jax.random.split(key, 4)
    s1 = 1.0 / math.sqrt(channels)
    s2 = 1.0 / math.sqrt(bottleneck)
    w1 = jax.random.uniform(k1, (channels, bottleneck), jnp.float32, -s1, s1)
    b1 = jax.random.uniform(k2, (bottleneck,), jnp.float32, -s1, s1)
    w2 = jax.random.uniform(k3, (bottleneck, channels), jnp.float32, -s2, s2)
    b2 = jax.random.uniform(k4, (channels,), jnp.float32, -s2, s2)
    return w1, b1, w2, b2


if __name__ == "__main__":
    # SEModule(channels=128, bottleneck=128) on a (B=2, C=128, T=16) input.
    B, C, T = 2, 128, 16
    key = jax.random.PRNGKey(0)
    kx, kp = jax.random.split(key)
    x = jax.random.normal(kx, (B, C, T), jnp.float32)
    w1, b1, w2, b2 = init_params(kp, C, bottleneck=128)

    fwd = jax.jit(se_module)
    out = jax.block_until_ready(fwd(x, w1, b1, w2, b2))

    # Pure-JAX reference (same math) for a correctness sanity check.
    m = jnp.mean(x, axis=2)                            # (B, C)
    h = jnp.maximum(m @ w1 + b1, 0.0)                  # (B, K)
    s = jax.nn.sigmoid(h @ w2 + b2)                    # (B, C)
    ref = x * s[:, :, None]                            # (B, C, T)

    assert out.shape == (B, C, T)
    assert bool(jnp.all(jnp.isfinite(out)))
    assert bool(jnp.allclose(out, ref, atol=1e-4, rtol=1e-4))
    print("KERNEL_OK")
</pallas_src>

<mosaic_0001>
module attributes {stable_mosaic.version = 11 : i64} {
  func.func @_se_kernel(%arg0: i32, %arg1: memref<1x128x16xf32, #tpu.memory_space<vmem>>, %arg2: memref<128x128xf32, #tpu.memory_space<vmem>>, %arg3: memref<1x128xf32, #tpu.memory_space<vmem>>, %arg4: memref<128x128xf32, #tpu.memory_space<vmem>>, %arg5: memref<1x128xf32, #tpu.memory_space<vmem>>, %arg6: memref<1x128x16xf32, #tpu.memory_space<vmem>>) attributes {dimension_semantics = [#tpu.dimension_semantics<parallel>], iteration_bounds = array<i64: 2>, scalar_prefetch = 0 : i64, scratch_operands = 0 : i64, tpu.core_type = #tpu.core_type<tc>, window_params = [{transform_indices = @transform_0, window_bounds = array<i64: 1, 128, 16>}, {pipeline_mode = #tpu.pipeline_mode<synchronous>, transform_indices = @transform_1, window_bounds = array<i64: 128, 128>}, {pipeline_mode = #tpu.pipeline_mode<synchronous>, transform_indices = @transform_2, window_bounds = array<i64: 1, 128>}, {pipeline_mode = #tpu.pipeline_mode<synchronous>, transform_indices = @transform_3, window_bounds = array<i64: 128, 128>}, {pipeline_mode = #tpu.pipeline_mode<synchronous>, transform_indices = @transform_4, window_bounds = array<i64: 1, 128>}, {transform_indices = @transform_5, window_bounds = array<i64: 1, 128, 16>}]} {
    %c0 = arith.constant 0 : index
    %c0_0 = arith.constant 0 : index
    %c0_1 = arith.constant 0 : index
    %0 = vector.load %arg1[%c0, %c0_0, %c0_1] : memref<1x128x16xf32, #tpu.memory_space<vmem>>, vector<1x128x16xf32>
    %cst = arith.constant dense<0.000000e+00> : vector<1x128xf32>
    %1 = vector.multi_reduction <add>, %0, %cst [2] : vector<1x128x16xf32> to vector<1x128xf32>
    %cst_2 = arith.constant 1.600000e+01 : f32
    %2 = vector.broadcast %cst_2 : f32 to vector<1x128xf32>
    %3 = arith.divf %1, %2 : vector<1x128xf32>
    %c0_3 = arith.constant 0 : index
    %c0_4 = arith.constant 0 : index
    %4 = vector.load %arg2[%c0_3, %c0_4] : memref<128x128xf32, #tpu.memory_space<vmem>>, vector<128x128xf32>
    %cst_5 = arith.constant dense<0.000000e+00> : vector<1x128xf32>
    %5 = tpu.matmul %3, %4, %cst_5 {dimension_numbers = #tpu.dot_dimension_numbers<[1], [0], [0], [1], [0, 0, 1, 1], [], []>} : vector<1x128xf32>, vector<128x128xf32>, vector<1x128xf32> -> vector<1x128xf32>
    %c0_6 = arith.constant 0 : index
    %c0_7 = arith.constant 0 : index
    %6 = vector.load %arg3[%c0_6, %c0_7] : memref<1x128xf32, #tpu.memory_space<vmem>>, vector<1x128xf32>
    %7 = arith.addf %5, %6 : vector<1x128xf32>
    %cst_8 = arith.constant 0.000000e+00 : f32
    %8 = vector.broadcast %cst_8 : f32 to vector<1x128xf32>
    %9 = arith.maximumf %7, %8 : vector<1x128xf32>
    %c0_9 = arith.constant 0 : index
    %c0_10 = arith.constant 0 : index
    %10 = vector.load %arg4[%c0_9, %c0_10] : memref<128x128xf32, #tpu.memory_space<vmem>>, vector<128x128xf32>
    %cst_11 = arith.constant dense<0.000000e+00> : vector<1x128xf32>
    %11 = tpu.matmul %9, %10, %cst_11 {dimension_numbers = #tpu.dot_dimension_numbers<[1], [0], [0], [1], [0, 0, 1, 1], [], []>} : vector<1x128xf32>, vector<128x128xf32>, vector<1x128xf32> -> vector<1x128xf32>
    %c0_12 = arith.constant 0 : index
    %c0_13 = arith.constant 0 : index
    %12 = vector.load %arg5[%c0_12, %c0_13] : memref<1x128xf32, #tpu.memory_space<vmem>>, vector<1x128xf32>
    %13 = arith.addf %11, %12 : vector<1x128xf32>
    %14 = arith.negf %13 : vector<1x128xf32>
    %15 = math.exp %14 : vector<1x128xf32>
    %cst_14 = arith.constant 1.000000e+00 : f32
    %16 = vector.broadcast %cst_14 : f32 to vector<1x128xf32>
    %17 = arith.addf %16, %15 : vector<1x128xf32>
    %18 = arith.divf %16, %17 : vector<1x128xf32>
    %19 = vector.shape_cast %18 : vector<1x128xf32> to vector<1x128x1xf32>
    %20 = vector.broadcast %19 : vector<1x128x1xf32> to vector<1x128x16xf32>
    %21 = arith.mulf %0, %20 : vector<1x128x16xf32>
    %c0_15 = arith.constant 0 : index
    %c0_16 = arith.constant 0 : index
    %c0_17 = arith.constant 0 : index
    %22 = vector.load %arg6[%c0_15, %c0_16, %c0_17] : memref<1x128x16xf32, #tpu.memory_space<vmem>>, vector<1x128x16xf32>
    tpu.vector_store %arg6[%c0_15, %c0_16, %c0_17], %21 {strides = array<i32>} : memref<1x128x16xf32, #tpu.memory_space<vmem>>, vector<1x128x16xf32>,
    return
  }
  func.func @transform_0(%arg0: i32) -> (i32, i32, i32) {
    %c0_i32 = arith.constant 0 : i32
    %c0_i32_0 = arith.constant 0 : i32
    %c0_i32_1 = arith.constant 0 : i32
    return %arg0, %c0_i32, %c0_i32_0 : i32, i32, i32
  }
  func.func @transform_1(%arg0: i32) -> (i32, i32) {
    %c0_i32 = arith.constant 0 : i32
    %c0_i32_0 = arith.constant 0 : i32
    %c0_i32_1 = arith.constant 0 : i32
    return %c0_i32, %c0_i32_0 : i32, i32
  }
  func.func @transform_2(%arg0: i32) -> (i32, i32) {
    %c0_i32 = arith.constant 0 : i32
    %c0_i32_0 = arith.constant 0 : i32
    %c0_i32_1 = arith.constant 0 : i32
    return %c0_i32, %c0_i32_0 : i32, i32
  }
  func.func @transform_3(%arg0: i32) -> (i32, i32) {
    %c0_i32 = arith.constant 0 : i32
    %c0_i32_0 = arith.constant 0 : i32
    %c0_i32_1 = arith.constant 0 : i32
    return %c0_i32, %c0_i32_0 : i32, i32
  }
  func.func @transform_4(%arg0: i32) -> (i32, i32) {
    %c0_i32 = arith.constant 0 : i32
    %c0_i32_0 = arith.constant 0 : i32
    %c0_i32_1 = arith.constant 0 : i32
    return %c0_i32, %c0_i32_0 : i32, i32
  }
  func.func @transform_5(%arg0: i32) -> (i32, i32, i32) {
    %c0_i32 = arith.constant 0 : i32
    %c0_i32_0 = arith.constant 0 : i32
    %c0_i32_1 = arith.constant 0 : i32
    return %arg0, %c0_i32, %c0_i32_0 : i32, i32, i32
  }
}

</mosaic_0001>

<llo_original>
// kernel: se_module.1
$region0: #{se_module.1}
  #allocation0 [shape = 'u32[]', space=smem, size = 0x4, offset = 0x4, fixed_abs, tag = 'smem constant byte address 0x4 - core index']
  #allocation1 [shape = 'u32[72,128]{1,0:T(1,128)}', space=vmem, size = 0x9000, scoped, tag = 'internal scratch']
  %s0 = inlined_call_operand.vmem [shape: f32[2,128,16], index: 0, kind: input, shape index: {}]
  %s1 = inlined_call_operand.vmem [shape: f32[128,128], index: 1, kind: input, shape index: {}]
  %s2 = inlined_call_operand.vmem [shape: f32[1,128], index: 2, kind: input, shape index: {}]
  %s3 = inlined_call_operand.vmem [shape: f32[128,128], index: 3, kind: input, shape index: {}]
  %s4 = inlined_call_operand.vmem [shape: f32[1,128], index: 4, kind: input, shape index: {}]
  %s5 = inlined_call_operand.vmem [shape: f32[2,128,16], index: 5, kind: output, shape index: {}]
  %s6 = sld [smem:[#allocation0]]
  $region53: #{se_module.1} parent=0
    _
  %s8 = ssub.s32 1, %s6
  %s9 = scalar_select 0, %s8, %s6
  loop: start=0, step=1, limit=4
  $region2: #{se_module.1} parent=0 // loop_pre_header
    _
  $region3: #{se_module.1} parent=0 // loop_header
    %s11 = sphi 0, %s15
    %p12 = scmp.ge.s32.totalorder %s11, 4
    %s21 = sphi 0, %s23
    %s24 = sphi 0, %s21
    %s25 = sphi 0, %s24
    %s41 = sphi 0, %s25
    %s45 = sphi 0, %s45
    %s47 = sphi 0, %s45
    %s48 = sphi 0, %s47
    %s62 = sphi 0, %s48
    %s66 = sphi 0, %s66
    %s68 = sphi 0, %s66
    %s69 = sphi 0, %s68
    %s83 = sphi 0, %s69
    %s87 = sphi 0, %s87
    %s89 = sphi 0, %s87
    %s90 = sphi 0, %s89
    %s104 = sphi 0, %s90
    %s108 = sphi 0, %s108
    %s110 = sphi 0, %s108
    %s111 = sphi 0, %s110
    %s125 = sphi 0, %s111
    %s131 = sphi 0, %s133
    %s134 = sphi 0, %s131
    %s135 = sphi 0, %s134
    %s151 = sphi 0, %s135
  $region4: #{se_module.1} parent=0 // loop_header_branch
    %14 = sbr.rel (%p12) target = $region8
  $region5: #{se_module.1} parent=0 // loop_body
    %s16 = ssub.s32 %s11, 1
    %s17 = ssub.s32 %s11, 2
    %s18 = sadd.s32 %s11, 1
    %s19 = ssub.s32 %s11, %s18
    %p20 = scmp.eq.s32.totalorder %s19, 0
    %s22 = sadd.s32 %s21, 1
    %s23 = scalar_select %p20, %s21, %s22
    %p26 = pneg %p20
    %p27 = scmp.eq.s32.totalorder %s11, 1
    %p28 = por %p26, %p27
    %p29 = scmp.ne.s32.totalorder %s21, %s24
    %p30 = scmp.eq.s32.totalorder %s11, 0
    %p31 = por %p29, %p30
    %p32 = scmp.ne.s32.totalorder %s21, %s24
    %p33 = scmp.eq.s32.totalorder %s16, 1
    %p34 = por %p32, %p33
    %p35 = scmp.ne.s32.totalorder %s24, %s25
    %p36 = scmp.eq.s32.totalorder %s16, 0
    %p37 = por %p35, %p36
    %p38 = scmp.ne.s32.totalorder %s24, %s25
    %p39 = scmp.eq.s32.totalorder %s17, 1
    %p40 = por %p38, %p39
    %p42 = scmp.ne.s32.totalorder %s25, %s41
    %p43 = scmp.eq.s32.totalorder %s17, 0
    %p44 = por %p42, %p43
    %s46 = sadd.s32 %s45, 1
    %p49 = scmp.eq.s32.totalorder %s11, 1
    %p50 = scmp.ne.s32.totalorder %s45, %s47
    %p51 = scmp.eq.s32.totalorder %s11, 0
    %p52 = por %p50, %p51
    %p53 = scmp.ne.s32.totalorder %s45, %s47
    %p54 = scmp.eq.s32.totalorder %s16, 1
    %p55 = por %p53, %p54
    %p56 = scmp.ne.s32.totalorder %s47, %s48
    %p57 = scmp.eq.s32.totalorder %s16, 0
    %p58 = por %p56, %p57
    %p59 = scmp.ne.s32.totalorder %s47, %s48
    %p60 = scmp.eq.s32.totalorder %s17, 1
    %p61 = por %p59, %p60
    %p63 = scmp.ne.s32.totalorder %s48, %s62
    %p64 = scmp.eq.s32.totalorder %s17, 0
    %p65 = por %p63, %p64
    %s67 = sadd.s32 %s66, 1
    %p70 = scmp.eq.s32.totalorder %s11, 1
    %p71 = scmp.ne.s32.totalorder %s66, %s68
    %p72 = scmp.eq.s32.totalorder %s11, 0
    %p73 = por %p71, %p72
    %p74 = scmp.ne.s32.totalorder %s66, %s68
    %p75 = scmp.eq.s32.totalorder %s16, 1
    %p76 = por %p74, %p75
    %p77 = scmp.ne.s32.totalorder %s68, %s69
    %p78 = scmp.eq.s32.totalorder %s16, 0
    %p79 = por %p77, %p78
    %p80 = scmp.ne.s32.totalorder %s68, %s69
    %p81 = scmp.eq.s32.totalorder %s17, 1
    %p82 = por %p80, %p81
    %p84 = scmp.ne.s32.totalorder %s69, %s83
    %p85 = scmp.eq.s32.totalorder %s17, 0
    %p86 = por %p84, %p85
    %s88 = sadd.s32 %s87, 1
    %p91 = scmp.eq.s32.totalorder %s11, 1
    %p92 = scmp.ne.s32.totalorder %s87, %s89
    %p93 = scmp.eq.s32.totalorder %s11, 0
    %p94 = por %p92, %p93
    %p95 = scmp.ne.s32.totalorder %s87, %s89
    %p96 = scmp.eq.s32.totalorder %s16, 1
    %p97 = por %p95, %p96
    %p98 = scmp.ne.s32.totalorder %s89, %s90
    %p99 = scmp.eq.s32.totalorder %s16, 0
    %p100 = por %p98, %p99
    %p101 = scmp.ne.s32.totalorder %s89, %s90
    %p102 = scmp.eq.s32.totalorder %s17, 1
    %p103 = por %p101, %p102
    %p105 = scmp.ne.s32.totalorder %s90, %s104
    %p106 = scmp.eq.s32.totalorder %s17, 0
    %p107 = por %p105, %p106
    %s109 = sadd.s32 %s108, 1
    %p112 = scmp.eq.s32.totalorder %s11, 1
    %p113 = scmp.ne.s32.totalorder %s108, %s110
    %p114 = scmp.eq.s32.totalorder %s11, 0
    %p115 = por %p113, %p114
    %p116 = scmp.ne.s32.totalorder %s108, %s110
    %p117 = scmp.eq.s32.totalorder %s16, 1
    %p118 = por %p116, %p117
    %p119 = scmp.ne.s32.totalorder %s110, %s111
    %p120 = scmp.eq.s32.totalorder %s16, 0
    %p121 = por %p119, %p120
    %p122 = scmp.ne.s32.totalorder %s110, %s111
    %p123 = scmp.eq.s32.totalorder %s17, 1
    %p124 = por %p122, %p123
    %p126 = scmp.ne.s32.totalorder %s111, %s125
    %p127 = scmp.eq.s32.totalorder %s17, 0
    %p128 = por %p126, %p127
    %s129 = ssub.s32 %s11, %s18
    %p130 = scmp.eq.s32.totalorder %s129, 0
    %s132 = sadd.s32 %s131, 1
    %s133 = scalar_select %p130, %s131, %s132
    %p136 = pneg %p130
    %p137 = scmp.eq.s32.totalorder %s11, 1
    %p138 = por %p136, %p137
    %p139 = scmp.ne.s32.totalorder %s131, %s134
    %p140 = scmp.eq.s32.totalorder %s11, 0
    %p141 = por %p139, %p140
    %p142 = scmp.ne.s32.totalorder %s131, %s134
    %p143 = scmp.eq.s32.totalorder %s16, 1
    %p144 = por %p142, %p143
    %p145 = scmp.ne.s32.totalorder %s134, %s135
    %p146 = scmp.eq.s32.totalorder %s16, 0
    %p147 = por %p145, %p146
    %p148 = scmp.ne.s32.totalorder %s134, %s135
    %p149 = scmp.eq.s32.totalorder %s17, 1
    %p150 = por %p148, %p149
    %p152 = scmp.ne.s32.totalorder %s135, %s151
    %p153 = scmp.eq.s32.totalorder %s17, 0
    %p154 = por %p152, %p153
    %p155 = scmp.le.s32.totalorder 1, %s11
    %p156 = scmp.lt.s32.totalorder %s11, 3
    %p157 = pnand %p155, %p156
    %p158 = pneg %p157
    // Predicated region
    $region9: #{se_module.1} parent=5 // pred_check
      _
    $region10: #{se_module.1} parent=5 // pred_check_branch
      %160 = sbr.rel (%p157) target = $region12
    $region11: #{se_module.1} parent=5 // pred_region
      %s161 = ssub.s32 %s11, 1
      // Predicated region
      $region13: #{se_module.1} parent=11 // pred_check
        %p162 = pneg %p58
      $region14: #{se_module.1} parent=11 // pred_check_branch
        %164 = sbr.rel (%p162) target = $region16
      $region15: #{se_module.1} parent=11 // pred_region
        _
      $region16: #{se_module.1} parent=11 // pred_fallthru
        _
      // Predicated region
      $region17: #{se_module.1} parent=11 // pred_check
        %p165 = pneg %p79
      $region18: #{se_module.1} parent=11 // pred_check_branch
        %167 = sbr.rel (%p165) target = $region20
      $region19: #{se_module.1} parent=11 // pred_region
        _
      $region20: #{se_module.1} parent=11 // pred_fallthru
        _
      // Predicated region
      $region21: #{se_module.1} parent=11 // pred_check
        %p168 = pneg %p100
      $region22: #{se_module.1} parent=11 // pred_check_branch
        %170 = sbr.rel (%p168) target = $region24
      $region23: #{se_module.1} parent=11 // pred_region
        _
      $region24: #{se_module.1} parent=11 // pred_fallthru
        _
      // Predicated region
      $region25: #{se_module.1} parent=11 // pred_check
        %p171 = pneg %p121
      $region26: #{se_module.1} parent=11 // pred_check_branch
        %173 = sbr.rel (%p171) target = $region28
      $region27: #{se_module.1} parent=11 // pred_region
        _
      $region28: #{se_module.1} parent=11 // pred_fallthru
        _
    $region12: #{se_module.1} parent=5 // pred_fallthru
      _
    %p174 = scmp.lt.s32.totalorder %s11, 2
    // Predicated region
    $region29: #{se_module.1} parent=5 // pred_check
      %p175 = pneg %p174
    $region30: #{se_module.1} parent=5 // pred_check_branch
      %177 = sbr.rel (%p175) target = $region32
    $region31: #{se_module.1} parent=5 // pred_region
      // Predicated region
      $region33: #{se_module.1} parent=31 // pred_check
        %p178 = pneg %p31
      $region34: #{se_module.1} parent=31 // pred_check_branch
        %180 = sbr.rel (%p178) target = $region36
      $region35: #{se_module.1} parent=31 // pred_region
        %p181 = scmp.lt.s32.totalorder %s11, 1
        %s182 = scalar_select %p181, %s11, 1
        %s183 = smul.addr %s182, 16
        %s184 = smul.addr %s183, 8
        %s185 = scalar_lea.vmem %s0, %s184
      $region36: #{se_module.1} parent=31 // pred_fallthru
        _
    $region32: #{se_module.1} parent=5 // pred_fallthru
      _
    %p186 = scmp.le.s32.totalorder 1, %s11
    %p187 = scmp.lt.s32.totalorder %s11, 3
    %p188 = pnand %p186, %p187
    %p189 = pneg %p188
    // Predicated region
    $region37: #{se_module.1} parent=5 // pred_check
      _
    $region38: #{se_module.1} parent=5 // pred_check_branch
      %191 = sbr.rel (%p188) target = $region40
    $region39: #{se_module.1} parent=5 // pred_region
      %s192 = ssub.s32 %s11, 1
      %p193 = scmp.lt.s32.totalorder %s16, 1
      %s194 = scalar_select %p193, %s16, 1
      %s195 = smul.addr %s194, 16
      %s196 = smul.addr %s195, 8
      %s197 = scalar_lea.vmem %s0, %s196
      %p198 = pneg %p37
      %p199 = pneg %p34
      %p200 = pneg %p58
      %p201 = pneg %p55
      %p202 = pneg %p79
      %p203 = pneg %p76
      %p204 = pneg %p100
      %p205 = pneg %p97
      %p206 = pneg %p121
      %p207 = pneg %p118
      %p208 = pneg %p147
      %p209 = pneg %p144
      %p210 = scmp.lt.s32.totalorder %s16, 1
      %s211 = scalar_select %p210, %s16, 1
      %s212 = smul.addr %s211, 16
      %s213 = smul.addr %s212, 8
      %s214 = scalar_lea.vmem %s5, %s213
      %p215 = scmp.lt.s32.totalorder %s16, 1
      %s216 = scalar_select %p215, %s16, 1
      %s217 = smul.addr %s216, 16
      %s218 = smul.addr %s217, 8
      %s219 = scalar_lea.vmem %s0, %s218
      %p220 = scmp.lt.s32.totalorder %s16, 1
      %s221 = scalar_select %p220, %s16, 1
      %s222 = smul.addr %s221, 16
      %s223 = smul.addr %s222, 8
      %s224 = scalar_lea.vmem %s5, %s223
      %v225 = vld [vmem:[%s219] sm:$0xff]
      %v226 = vld [vmem:[%s219 + $0x8] sm:$0xff]
      %v227 = vld [vmem:[%s219 + $0x10] sm:$0xff]
      %v228 = vld [vmem:[%s219 + $0x18] sm:$0xff]
      %v229 = vld [vmem:[%s219 + $0x20] sm:$0xff]
      %v230 = vld [vmem:[%s219 + $0x28] sm:$0xff]
      %v231 = vld [vmem:[%s219 + $0x30] sm:$0xff]
      %v232 = vld [vmem:[%s219 + $0x38] sm:$0xff]
      %v233 = vld [vmem:[%s219 + $0x40] sm:$0xff]
      %v234 = vld [vmem:[%s219 + $0x48] sm:$0xff]
      %v235 = vld [vmem:[%s219 + $0x50] sm:$0xff]
      %v236 = vld [vmem:[%s219 + $0x58] sm:$0xff]
      %v237 = vld [vmem:[%s219 + $0x60] sm:$0xff]
      %v238 = vld [vmem:[%s219 + $0x68] sm:$0xff]
      %v239 = vld [vmem:[%s219 + $0x70] sm:$0xff]
      %v240 = vld [vmem:[%s219 + $0x78] sm:$0xff]
      %vm241 = vcmask 130048
      %v242 = vsel %vm241, %v225, 0.0
      %243 = vadd.xlane.f32.xlu0 %v242
      %v244 = vpop.xlane.xlu0 %243
      %v245 = vsel %vm241, %v226, 0.0
      %246 = vadd.xlane.f32.xlu0 %v245
      %v247 = vpop.xlane.xlu0 %246
      %v248 = vsel %vm241, %v227, 0.0
      %249 = vadd.xlane.f32.xlu0 %v248
      %v250 = vpop.xlane.xlu0 %249
      %v251 = vsel %vm241, %v228, 0.0
      %252 = vadd.xlane.f32.xlu0 %v251
      %v253 = vpop.xlane.xlu0 %252
      %v254 = vsel %vm241, %v229, 0.0
      %255 = vadd.xlane.f32.xlu0 %v254
      %v256 = vpop.xlane.xlu0 %255
      %v257 = vsel %vm241, %v230, 0.0
      %258 = vadd.xlane.f32.xlu0 %v257
      %v259 = vpop.xlane.xlu0 %258
      %v260 = vsel %vm241, %v231, 0.0
      %261 = vadd.xlane.f32.xlu0 %v260
      %v262 = vpop.xlane.xlu0 %261
      %v263 = vsel %vm241, %v232, 0.0
      %264 = vadd.xlane.f32.xlu0 %v263
      %v265 = vpop.xlane.xlu0 %264
      %v266 = vsel %vm241, %v233, 0.0
      %267 = vadd.xlane.f32.xlu0 %v266
      %v268 = vpop.xlane.xlu0 %267
      %v269 = vsel %vm241, %v234, 0.0
      %270 = vadd.xlane.f32.xlu0 %v269
      %v271 = vpop.xlane.xlu0 %270
      %v272 = vsel %vm241, %v235, 0.0
      %273 = vadd.xlane.f32.xlu0 %v272
      %v274 = vpop.xlane.xlu0 %273
      %v275 = vsel %vm241, %v236, 0.0
      %276 = vadd.xlane.f32.xlu0 %v275
      %v277 = vpop.xlane.xlu0 %276
      %v278 = vsel %vm241, %v237, 0.0
      %279 = vadd.xlane.f32.xlu0 %v278
      %v280 = vpop.xlane.xlu0 %279
      %v281 = vsel %vm241, %v238, 0.0
      %282 = vadd.xlane.f32.xlu0 %v281
      %v283 = vpop.xlane.xlu0 %282
      %v284 = vsel %vm241, %v239, 0.0
      %285 = vadd.xlane.f32.xlu0 %v284
      %v286 = vpop.xlane.xlu0 %285
      %v287 = vsel %vm241, %v240, 0.0
      %288 = vadd.xlane.f32.xlu0 %v287
      %v289 = vpop.xlane.xlu0 %288
      %v290 = vrcp.pop 16.0
      %v291 = vmul.f32 16.0, %v290
      %v292 = vsub.f32 1.0, %v291
      %v293 = vmul.f32 %v290, %v292
      %v294 = vadd.f32 %v290, %v293
      %vm295 = vweird.f32 %v290
      %v296 = vsel %vm295, %v290, %v294
      %v297 = vmul.f32 %v244, %v296
      %v298 = vmul.f32 %v247, %v296
      %v299 = vmul.f32 %v250, %v296
      %v300 = vmul.f32 %v253, %v296
      %v301 = vmul.f32 %v256, %v296
      %v302 = vmul.f32 %v259, %v296
      %v303 = vmul.f32 %v262, %v296
      %v304 = vmul.f32 %v265, %v296
      %v305 = vmul.f32 %v268, %v296
      %v306 = vmul.f32 %v271, %v296
      %v307 = vmul.f32 %v274, %v296
      %v308 = vmul.f32 %v277, %v296
      %v309 = vmul.f32 %v280, %v296
      %v310 = vmul.f32 %v283, %v296
      %v311 = vmul.f32 %v286, %v296
      %v312 = vmul.f32 %v289, %v296
      %v313 = vld [vmem:[%s1] sm:$0xff]
      %v314 = vld [vmem:[%s1 + $0x8] sm:$0xff]
      %v315 = vld [vmem:[%s1 + $0x10] sm:$0xff]
      %v316 = vld [vmem:[%s1 + $0x18] sm:$0xff]
      %v317 = vld [vmem:[%s1 + $0x20] sm:$0xff]
      %v318 = vld [vmem:[%s1 + $0x28] sm:$0xff]
      %v319 = vld [vmem:[%s1 + $0x30] sm:$0xff]
      %v320 = vld [vmem:[%s1 + $0x38] sm:$0xff]
      %v321 = vld [vmem:[%s1 + $0x40] sm:$0xff]
      %v322 = vld [vmem:[%s1 + $0x48] sm:$0xff]
      %v323 = vld [vmem:[%s1 + $0x50] sm:$0xff]
      %v324 = vld [vmem:[%s1 + $0x58] sm:$0xff]
      %v325 = vld [vmem:[%s1 + $0x60] sm:$0xff]
      %v326 = vld [vmem:[%s1 + $0x68] sm:$0xff]
      %v327 = vld [vmem:[%s1 + $0x70] sm:$0xff]
      %v328 = vld [vmem:[%s1 + $0x78] sm:$0xff]
      %v329 = vld [vmem:[%s2] sm:$0x1]
      %v346 = vlaneseq
      %v347 = vand.u32 %v346, 127
      %v348 = vperm.slane %v297, %v347
      %v349 = vadd.s32 %v347, 4294967288
      %v350 = vperm.slane %v298, %v349
      %vm351 = vcmask 130112
      %v352 = vsel %vm351, %v350, %v348
      %v353 = vadd.s32 %v347, 4294967280
      %v354 = vperm.slane %v299, %v353
      %vm355 = vcmask 195712
      %v356 = vsel %vm355, %v354, %v352
      %v357 = vadd.s32 %v347, 4294967272
      %v358 = vperm.slane %v300, %v357
      %vm359 = vcmask 261312
      %v360 = vsel %vm359, %v358, %v356
      %v361 = vadd.s32 %v347, 4294967264
      %v362 = vperm.slane %v301, %v361
      %vm363 = vcmask 326912
      %v364 = vsel %vm363, %v362, %v360
      %v365 = vadd.s32 %v347, 4294967256
      %v366 = vperm.slane %v302, %v365
      %vm367 = vcmask 392512
      %v368 = vsel %vm367, %v366, %v364
      %v369 = vadd.s32 %v347, 4294967248
      %v370 = vperm.slane %v303, %v369
      %vm371 = vcmask 458112
      %v372 = vsel %vm371, %v370, %v368
      %v373 = vadd.s32 %v347, 4294967240
      %v374 = vperm.slane %v304, %v373
      %vm375 = vcmask 523712
      %v376 = vsel %vm375, %v374, %v372
      %v377 = vadd.s32 %v347, 4294967232
      %v378 = vperm.slane %v305, %v377
      %vm379 = vcmask 589312
      %v380 = vsel %vm379, %v378, %v376
      %v381 = vadd.s32 %v347, 4294967224
      %v382 = vperm.slane %v306, %v381
      %vm383 = vcmask 654912
      %v384 = vsel %vm383, %v382, %v380
      %v385 = vadd.s32 %v347, 4294967216
      %v386 = vperm.slane %v307, %v385
      %vm387 = vcmask 720512
      %v388 = vsel %vm387, %v386, %v384
      %v389 = vadd.s32 %v347, 4294967208
      %v390 = vperm.slane %v308, %v389
      %vm391 = vcmask 786112
      %v392 = vsel %vm391, %v390, %v388
      %v393 = vadd.s32 %v347, 4294967200
      %v394 = vperm.slane %v309, %v393
      %vm395 = vcmask 851712
      %v396 = vsel %vm395, %v394, %v392
      %v397 = vadd.s32 %v347, 4294967192
      %v398 = vperm.slane %v310, %v397
      %vm399 = vcmask 917312
      %v400 = vsel %vm399, %v398, %v396
      %v401 = vadd.s32 %v347, 4294967184
      %v402 = vperm.slane %v311, %v401
      %vm403 = vcmask 982912
      %v404 = vsel %vm403, %v402, %v400
      %v405 = vadd.s32 %v347, 4294967176
      %v406 = vperm.slane %v312, %v405
      %vm407 = vcmask 1048512
      %v408 = vsel %vm407, %v406, %v404
      %410 = vmatpush.msra.mxu0 %v328
      %411 = vmatpush.msra.mxu0 %v327
      %412 = vmatpush.msra.mxu0 %v326
      %413 = vmatpush.msra.mxu0 %v325
      %414 = vmatpush.msra.mxu0 %v324
      %415 = vmatpush.msra.mxu0 %v323
      %416 = vmatpush.msra.mxu0 %v322
      %417 = vmatpush.msra.mxu0 %v321
      %418 = vmatpush.msra.mxu0 %v320
      %419 = vmatpush.msra.mxu0 %v319
      %420 = vmatpush.msra.mxu0 %v318
      %421 = vmatpush.msra.mxu0 %v317
      %422 = vmatpush.msra.mxu0 %v316
      %423 = vmatpush.msra.mxu0 %v315
      %424 = vmatpush.msra.mxu0 %v314
      %425 = vmatpush.msra.mxu0 %v313
      %426 = vmatmul.f32.gmra.mxu0 %v408
      %v427 = vpop.f32.mrf.mxu0
      %v428 = vadd.f32 %v329, %v427
      %429 = vdwg.mxu0
      %v430 = vmax.f32 %v428, 0.0
      %v431 = vld [vmem:[%s3] sm:$0xff]
      %v432 = vld [vmem:[%s3 + $0x8] sm:$0xff]
      %v433 = vld [vmem:[%s3 + $0x10] sm:$0xff]
      %v434 = vld [vmem:[%s3 + $0x18] sm:$0xff]
      %v435 = vld [vmem:[%s3 + $0x20] sm:$0xff]
      %v436 = vld [vmem:[%s3 + $0x28] sm:$0xff]
      %v437 = vld [vmem:[%s3 + $0x30] sm:$0xff]
      %v438 = vld [vmem:[%s3 + $0x38] sm:$0xff]
      %v439 = vld [vmem:[%s3 + $0x40] sm:$0xff]
      %v440 = vld [vmem:[%s3 + $0x48] sm:$0xff]
      %v441 = vld [vmem:[%s3 + $0x50] sm:$0xff]
      %v442 = vld [vmem:[%s3 + $0x58] sm:$0xff]
      %v443 = vld [vmem:[%s3 + $0x60] sm:$0xff]
      %v444 = vld [vmem:[%s3 + $0x68] sm:$0xff]
      %v445 = vld [vmem:[%s3 + $0x70] sm:$0xff]
      %v446 = vld [vmem:[%s3 + $0x78] sm:$0xff]
      %v447 = vld [vmem:[%s4] sm:$0x1]
      %448 = vmatpush.msra.mxu0 %v446
      %449 = vmatpush.msra.mxu0 %v445
      %450 = vmatpush.msra.mxu0 %v444
      %451 = vmatpush.msra.mxu0 %v443
      %452 = vmatpush.msra.mxu0 %v442
      %453 = vmatpush.msra.mxu0 %v441
      %454 = vmatpush.msra.mxu0 %v440
      %455 = vmatpush.msra.mxu0 %v439
      %456 = vmatpush.msra.mxu0 %v438
      %457 = vmatpush.msra.mxu0 %v437
      %458 = vmatpush.msra.mxu0 %v436
      %459 = vmatpush.msra.mxu0 %v435
      %460 = vmatpush.msra.mxu0 %v434
      %461 = vmatpush.msra.mxu0 %v433
      %462 = vmatpush.msra.mxu0 %v432
      %463 = vmatpush.msra.mxu0 %v431
      %464 = vmatmul.f32.gmra.mxu0 %v430
      %v465 = vpop.f32.mrf.mxu0
      %v466 = vadd.f32 %v447, %v465
      %467 = vdwg.mxu0
      %v468 = vxor.u32 %v466, 2147483648
      %v469 = vmul.f32 %v468, 1.442695
      %v470 = vpow.pop %v469
      %v471 = vadd.f32 %v470, 1.0
      %v472 = vrcp.pop %v471
      %v473 = vmul.f32 %v471, %v472
      %v474 = vsub.f32 1.0, %v473
      %v475 = vmul.f32 %v472, %v474
      %v476 = vadd.f32 %v472, %v475
      %vm477 = vweird.f32 %v471
      %vm478 = vweird.f32 %v472
      %vm479 = vmor %vm477, %vm478
      %v480 = vsel %vm479, %v472, %v476
      %v481 = vand.u32 2147483647, %v471
      %vm482 = vcmp.eq.f32.partialorder %v481, 8.507059e+37
      %v483 = vand.u32 %v471, 2147483648
      %v484 = vor.u32 1.1754944e-38, %v483
      %v485 = vsel %vm482, %v484, %v480
      %v486 = vmul.f32 1.0, %v485
      %v487 = vperm.slane %v486, 0
      %v488 = vlaneseq
      %v489 = vshrl.u32 %v488, 7
      %491 = vset.pattern.permute.xlu0 %v489
      %492 = vperm.xlu0 %491, %v487
      %v493 = vpop.permute.xlu0 %492
      %v494 = vlaneseq
      %v495 = vshrl.u32 %v494, 7
      %v496 = vadd.s32 %v495, 8
      %497 = vset.pattern.permute.xlu0 %v496
      %498 = vperm.xlu0 %497, %v487
      %v499 = vpop.permute.xlu0 %498
      %v500 = vlaneseq
      %v501 = vshrl.u32 %v500, 7
      %v502 = vadd.s32 %v501, 16
      %503 = vset.pattern.permute.xlu0 %v502
      %504 = vperm.xlu0 %503, %v487
      %v505 = vpop.permute.xlu0 %504
      %v506 = vlaneseq
      %v507 = vshrl.u32 %v506, 7
      %v508 = vadd.s32 %v507, 24
      %509 = vset.pattern.permute.xlu0 %v508
      %510 = vperm.xlu0 %509, %v487
      %v511 = vpop.permute.xlu0 %510
      %v512 = vlaneseq
      %v513 = vshrl.u32 %v512, 7
      %v514 = vadd.s32 %v513, 32
      %515 = vset.pattern.permute.xlu0 %v514
      %516 = vperm.xlu0 %515, %v487
      %v517 = vpop.permute.xlu0 %516
      %v518 = vlaneseq
      %v519 = vshrl.u32 %v518, 7
      %v520 = vadd.s32 %v519, 40
      %521 = vset.pattern.permute.xlu0 %v520
      %522 = vperm.xlu0 %521, %v487
      %v523 = vpop.permute.xlu0 %522
      %v524 = vlaneseq
      %v525 = vshrl.u32 %v524, 7
      %v526 = vadd.s32 %v525, 48
      %527 = vset.pattern.permute.xlu0 %v526
      %528 = vperm.xlu0 %527, %v487
      %v529 = vpop.permute.xlu0 %528
      %v530 = vlaneseq
      %v531 = vshrl.u32 %v530, 7
      %v532 = vadd.s32 %v531, 56
      %533 = vset.pattern.permute.xlu0 %v532
      %534 = vperm.xlu0 %533, %v487
      %v535 = vpop.permute.xlu0 %534
      %v536 = vlaneseq
      %v537 = vshrl.u32 %v536, 7
      %v538 = vadd.s32 %v537, 64
      %539 = vset.pattern.permute.xlu0 %v538
      %540 = vperm.xlu0 %539, %v487
      %v541 = vpop.permute.xlu0 %540
      %v542 = vlaneseq
      %v543 = vshrl.u32 %v542, 7
      %v544 = vadd.s32 %v543, 72
      %545 = vset.pattern.permute.xlu0 %v544
      %546 = vperm.xlu0 %545, %v487
      %v547 = vpop.permute.xlu0 %546
      %v548 = vlaneseq
      %v549 = vshrl.u32 %v548, 7
      %v550 = vadd.s32 %v549, 80
      %551 = vset.pattern.permute.xlu0 %v550
      %552 = vperm.xlu0 %551, %v487
      %v553 = vpop.permute.xlu0 %552
      %v554 = vlaneseq
      %v555 = vshrl.u32 %v554, 7
      %v556 = vadd.s32 %v555, 88
      %557 = vset.pattern.permute.xlu0 %v556
      %558 = vperm.xlu0 %557, %v487
      %v559 = vpop.permute.xlu0 %558
      %v560 = vlaneseq
      %v561 = vshrl.u32 %v560, 7
      %v562 = vadd.s32 %v561, 96
      %563 = vset.pattern.permute.xlu0 %v562
      %564 = vperm.xlu0 %563, %v487
      %v565 = vpop.permute.xlu0 %564
      %v566 = vlaneseq
      %v567 = vshrl.u32 %v566, 7
      %v568 = vadd.s32 %v567, 104
      %569 = vset.pattern.permute.xlu0 %v568
      %570 = vperm.xlu0 %569, %v487
      %v571 = vpop.permute.xlu0 %570
      %v572 = vlaneseq
      %v573 = vshrl.u32 %v572, 7
      %v574 = vadd.s32 %v573, 112
      %575 = vset.pattern.permute.xlu0 %v574
      %576 = vperm.xlu0 %575, %v487
      %v577 = vpop.permute.xlu0 %576
      %v578 = vlaneseq
      %v579 = vshrl.u32 %v578, 7
      %v580 = vadd.s32 %v579, 120
      %581 = vset.pattern.permute.xlu0 %v580
      %582 = vperm.xlu0 %581, %v487
      %v583 = vpop.permute.xlu0 %582
      %v584 = vmul.f32 %v225, %v493
      %v585 = vmul.f32 %v226, %v499
      %v586 = vmul.f32 %v227, %v505
      %v587 = vmul.f32 %v228, %v511
      %v588 = vmul.f32 %v229, %v517
      %v589 = vmul.f32 %v230, %v523
      %v590 = vmul.f32 %v231, %v529
      %v591 = vmul.f32 %v232, %v535
      %v592 = vmul.f32 %v233, %v541
      %v593 = vmul.f32 %v234, %v547
      %v594 = vmul.f32 %v235, %v553
      %v595 = vmul.f32 %v236, %v559
      %v596 = vmul.f32 %v237, %v565
      %v597 = vmul.f32 %v238, %v571
      %v598 = vmul.f32 %v239, %v577
      %v599 = vmul.f32 %v240, %v583
      %600 = vst.msk [vmem:[%s224] sm:$0xff] %vm241, %v584
      %601 = vst.msk [vmem:[%s224 + $0x8] sm:$0xff] %vm241, %v585
      %602 = vst.msk [vmem:[%s224 + $0x10] sm:$0xff] %vm241, %v586
      %603 = vst.msk [vmem:[%s224 + $0x18] sm:$0xff] %vm241, %v587
      %604 = vst.msk [vmem:[%s224 + $0x20] sm:$0xff] %vm241, %v588
      %605 = vst.msk [vmem:[%s224 + $0x28] sm:$0xff] %vm241, %v589
      %606 = vst.msk [vmem:[%s224 + $0x30] sm:$0xff] %vm241, %v590
      %607 = vst.msk [vmem:[%s224 + $0x38] sm:$0xff] %vm241, %v591
      %608 = vst.msk [vmem:[%s224 + $0x40] sm:$0xff] %vm241, %v592
      %609 = vst.msk [vmem:[%s224 + $0x48] sm:$0xff] %vm241, %v593
      %610 = vst.msk [vmem:[%s224 + $0x50] sm:$0xff] %vm241, %v594
      %611 = vst.msk [vmem:[%s224 + $0x58] sm:$0xff] %vm241, %v595
      %612 = vst.msk [vmem:[%s224 + $0x60] sm:$0xff] %vm241, %v596
      %613 = vst.msk [vmem:[%s224 + $0x68] sm:$0xff] %vm241, %v597
      %614 = vst.msk [vmem:[%s224 + $0x70] sm:$0xff] %vm241, %v598
      %615 = vst.msk [vmem:[%s224 + $0x78] sm:$0xff] %vm241, %v599
      %p616 = scmp.lt.s32.totalorder %s16, 1
      %s617 = scalar_select %p616, %s16, 1
      %s618 = smul.addr %s617, 16
      %s619 = smul.addr %s618, 8
      %s620 = scalar_lea.vmem %s5, %s619
      // Predicated region
      $region41: #{se_module.1} parent=39 // pred_check
        %p621 = pneg %p144
      $region42: #{se_module.1} parent=39 // pred_check_branch
        %623 = sbr.rel (%p621) target = $region44
      $region43: #{se_module.1} parent=39 // pred_region
        _
      $region44: #{se_module.1} parent=39 // pred_fallthru
        _
    $region40: #{se_module.1} parent=5 // pred_fallthru
      _
    %p624 = scmp.le.s32.totalorder 2, %s11
    // Predicated region
    $region45: #{se_module.1} parent=5 // pred_check
      %p625 = pneg %p624
    $region46: #{se_module.1} parent=5 // pred_check_branch
      %627 = sbr.rel (%p625) target = $region48
    $region47: #{se_module.1} parent=5 // pred_region
      %s628 = ssub.s32 %s11, 2
      // Predicated region
      $region49: #{se_module.1} parent=47 // pred_check
        %p629 = pneg %p150
      $region50: #{se_module.1} parent=47 // pred_check_branch
        %631 = sbr.rel (%p629) target = $region52
      $region51: #{se_module.1} parent=47 // pred_region
        %p632 = scmp.lt.s32.totalorder %s17, 1
        %s633 = scalar_select %p632, %s17, 1
        %s634 = smul.addr %s633, 16
        %s635 = smul.addr %s634, 8
        %s636 = scalar_lea.vmem %s5, %s635
      $region52: #{se_module.1} parent=47 // pred_fallthru
        _
    $region48: #{se_module.1} parent=5 // pred_fallthru
      _
  $region6: #{se_module.1} parent=0 // loop_footer
    %s15 = sadd.s32 1, %s11
  $region7: #{se_module.1} parent=0 // loop_footer_branch
    %10 = sbr.rel target = $region3
  $region8: #{se_module.1} parent=0 // loop_exit
    _

</llo_original>
